<compile_context>
chip_gen: v6e
topology: v6e:2x2x1
jax: 0.10.0
libtpu: 0.0.40
codegen_flags: <defaults>
</compile_context>

<pallas_src>
import functools

import jax
import jax.numpy as jnp
from jax.experimental import pallas as pl
from jax.experimental.pallas import tpu as pltpu


# ----------------------------------------------------------------------------
# Shared LayerNorm (annotated-transformer variant) used by both kernels.
# ----------------------------------------------------------------------------
def _layer_norm(x, gamma, beta, eps, approx_recip):
    d = x.shape[-1]
    mu = jnp.mean(x, axis=-1, keepdims=True)
    diff = x - mu
    # torch.Tensor.std(-1) is the *unbiased* std (divide by D-1); eps is added to std.
    var = jnp.sum(diff * diff, axis=-1, keepdims=True) * (1.0 / (d - 1))
    std = jnp.sqrt(var) + eps
    inv = pl.reciprocal(std, approx=True) if approx_recip else 1.0 / std
    return gamma * diff * inv + beta


# ----------------------------------------------------------------------------
# Kernel 1 (default): weights fully resident, one FFN shot per row block.
#   out = x + relu(LN(x) @ w1 + b1) @ w2 + b2
# ----------------------------------------------------------------------------
def sublayer_fused_kernel(x_ref, gamma_ref, beta_ref, w1_ref, b1_ref, w2_ref, b2_ref,
                          o_ref, *, eps, approx_recip):
    x = x_ref[...]
    xn = _layer_norm(x, gamma_ref[...], beta_ref[...], eps, approx_recip)
    xn = xn.astype(w1_ref.dtype)
    h = jnp.dot(xn, w1_ref[...], preferred_element_type=jnp.float32) + b1_ref[...]
    h = jnp.maximum(h, 0.0).astype(w2_ref.dtype)
    ffn = jnp.dot(h, w2_ref[...], preferred_element_type=jnp.float32) + b2_ref[...]
    o_ref[...] = x + ffn          # dropout == identity at inference


# ----------------------------------------------------------------------------
# Kernel 2 (fallback): FFN hidden dim tiled on an "arbitrary" grid axis with a
# resident f32 accumulator (b2 folded into init) and a matmul-dtype xn scratch.
# ----------------------------------------------------------------------------
def sublayer_tiled_kernel(x_ref, gamma_ref, beta_ref, w1_ref, b1_ref, w2_ref, b2_ref,
                          o_ref, xn_ref, acc_ref, *, eps, approx_recip):
    fi = pl.program_id(1)

    @pl.when(fi == 0)
    def _init():
        xn = _layer_norm(x_ref[...], gamma_ref[...], beta_ref[...], eps, approx_recip)
        xn_ref[...] = xn.astype(xn_ref.dtype)                      # cast ONCE per row block
        acc_ref[...] = jnp.broadcast_to(b2_ref[...], acc_ref.shape)  # fold b2 into init

    # Contribution of this hidden tile: relu(xn @ w1[:, f] + b1[f]) @ w2[f, :]
    h = jnp.dot(xn_ref[...], w1_ref[...], preferred_element_type=jnp.float32) + b1_ref[...]
    h = jnp.maximum(h, 0.0).astype(w2_ref.dtype)
    acc_ref[...] += jnp.dot(h, w2_ref[...], preferred_element_type=jnp.float32)

    @pl.when(fi == pl.num_programs(1) - 1)
    def _finalize():
        o_ref[...] = x_ref[...] + acc_ref[...]                     # residual; b2 already in acc


# ----------------------------------------------------------------------------
# Tile selection helpers (generation-aware VMEM budget).
# ----------------------------------------------------------------------------
def _vmem_budget_bytes():
    cap = 64 * 1024 * 1024                      # conservative default (v7x per-core VMEM)
    try:
        info = pltpu.get_tpu_info()
        cap = int(getattr(info, "vmem_capacity_bytes", cap) or cap)
    except Exception:
        pass
    # ~25% headroom for compiler-internal scratch; cap at 100 MiB on 128 MiB chips.
    return min(cap * 3 // 4, 100 * 1024 * 1024)


def _pick_row_block(n, fits):
    """Largest sublane-aligned row block fitting the budget; tiny N -> single block."""
    if n <= 512 or fits(n):
        return n                                # grid=(1,...) for small problems
    for cand in (4096, 2048, 1024, 512, 256, 128, 64, 32, 16, 8):
        if n % cand == 0 and fits(cand):
            return cand
    return n                                    # nothing aligned fits: rely on vmem headroom


# ----------------------------------------------------------------------------
# Wrapper.
# ----------------------------------------------------------------------------
def prepare_params(params, matmul_dtype=jnp.bfloat16):
    """Pre-cast the matmul weights ONCE; persist the result outside the forward path."""
    out = dict(params)
    out["w1"] = params["w1"].astype(matmul_dtype)
    out["w2"] = params["w2"].astype(matmul_dtype)
    return out


def sublayer_connection_forward(x, params, *, row_block=None, f_block=None, eps=1e-6,
                                force_tiled=False, vmem_budget_bytes=None):
    """Pallas equivalent of SublayerConnection.forward(x, sublayer=FFN) at inference."""
    B, S, D = x.shape
    w1, w2 = params["w1"], params["w2"]
    F = w1.shape[1]
    N = B * S
    x2d = x.reshape(N, D)

    matmul_dtype = w1.dtype                     # weights already cast via prepare_params()
    wbytes = jnp.dtype(matmul_dtype).itemsize
    approx_recip = jnp.dtype(matmul_dtype) != jnp.dtype(jnp.float32)
    budget = _vmem_budget_bytes() if vmem_budget_bytes is None else int(vmem_budget_bytes)

    bias_bytes = 2 * (3 * D + F) * 4            # gamma/beta/b2 + b1, double-buffered
    weights_full = 2 * 2 * D * F * wbytes       # resident w1 + w2 (double-buffered)

    def fused_bytes(rb):
        io = 2 * rb * D * 4 * 2                               # x in + out, f32, 2 buffers
        inter = rb * D * (8 + 2 * wbytes) + rb * F * (4 + wbytes)
        return weights_full + bias_bytes + io + inter

    min_rb = N if N <= 256 else 256
    use_tiled = force_tiled or (f_block is not None) or (fused_bytes(min_rb) > budget)

    compiler = lambda sem: pltpu.CompilerParams(dimension_semantics=sem,
                                                vmem_limit_bytes=int(budget))

    if not use_tiled:
        # -------- fused path: weights DMA'd from HBM exactly once for the whole grid ----
        rb = row_block if row_block is not None else _pick_row_block(N, lambda r: fused_bytes(r) <= budget)
        assert N % rb == 0, f"row_block {rb} must divide N={N}"
        kernel = functools.partial(sublayer_fused_kernel, eps=eps, approx_recip=approx_recip)
        out2d = pl.pallas_call(
            kernel,
            out_shape=jax.ShapeDtypeStruct((N, D), jnp.float32),
            grid=(N // rb,),
            in_specs=[
                pl.BlockSpec((rb, D), lambda r: (r, 0)),     # x rows
                pl.BlockSpec((1, D),  lambda r: (0, 0)),     # gamma (a_2)
                pl.BlockSpec((1, D),  lambda r: (0, 0)),     # beta  (b_2)
                pl.BlockSpec((D, F),  lambda r: (0, 0)),     # w1, resident
                pl.BlockSpec((1, F),  lambda r: (0, 0)),     # b1
                pl.BlockSpec((F, D),  lambda r: (0, 0)),     # w2, resident
                pl.BlockSpec((1, D),  lambda r: (0, 0)),     # b2
            ],
            out_specs=pl.BlockSpec((rb, D), lambda r: (r, 0)),
            compiler_params=compiler(("parallel",)),
        )(x2d, params["gamma"], params["beta"], w1, params["b1"], w2, params["b2"])
        return out2d.reshape(B, S, D)

    # -------- F-tiled fallback: large D*F (needed sooner on v7x's 64 MiB VMEM) ----------
    f_cands = [f_block] if f_block is not None else ([c for c in (512, 256, 128) if F % c == 0] or [F])

    def tiled_bytes(rb, fb):
        io = 2 * rb * D * 4 * 2
        wtiles = 2 * 2 * D * fb * wbytes                       # w1/w2 tiles, double-buffered
        scratch = rb * D * (wbytes + 4)                        # xn (matmul dtype) + acc (f32)
        inter = rb * fb * (4 + wbytes)                         # h in f32 + cast copy
        return io + wtiles + scratch + inter + bias_bytes

    rb_sel, fb_sel = None, None
    for fb in f_cands:
        fits = lambda r, fb=fb: tiled_bytes(r, fb) <= budget
        rb = row_block if row_block is not None else _pick_row_block(N, fits)
        rb_sel, fb_sel = rb, fb
        if fits(rb):
            break
    rb, fb = rb_sel, fb_sel
    assert N % rb == 0, f"row_block {rb} must divide N={N}"
    assert F % fb == 0, f"f_block {fb} must divide F={F}"

    kernel = functools.partial(sublayer_tiled_kernel, eps=eps, approx_recip=approx_recip)
    out2d = pl.pallas_call(
        kernel,
        out_shape=jax.ShapeDtypeStruct((N, D), jnp.float32),
        grid=(N // rb, F // fb),
        in_specs=[
            pl.BlockSpec((rb, D),  lambda r, f: (r, 0)),      # x rows
            pl.BlockSpec((1, D),   lambda r, f: (0, 0)),      # gamma
            pl.BlockSpec((1, D),   lambda r, f: (0, 0)),      # beta
            pl.BlockSpec((D, fb),  lambda r, f: (0, f)),      # w1 tile
            pl.BlockSpec((1, fb),  lambda r, f: (0, f)),      # b1 tile
            pl.BlockSpec((fb, D),  lambda r, f: (f, 0)),      # w2 tile
            pl.BlockSpec((1, D),   lambda r, f: (0, 0)),      # b2
        ],
        out_specs=pl.BlockSpec((rb, D), lambda r, f: (r, 0)),
        scratch_shapes=[
            pltpu.VMEM((rb, D), matmul_dtype),                # xn, written once per row block
            pltpu.VMEM((rb, D), jnp.float32),                 # FFN accumulator (init = b2)
        ],
        compiler_params=compiler(("parallel", "arbitrary")),
    )(x2d, params["gamma"], params["beta"], w1, params["b1"], w2, params["b2"])
    return out2d.reshape(B, S, D)


# ----------------------------------------------------------------------------
# Deterministic parameter init + pure-JAX (PyTorch-faithful) reference.
# ----------------------------------------------------------------------------
def init_sublayer_params(key, d_model, d_ff):
    k1, k2, k3, k4, k5, k6 = jax.random.split(key, 6)
    s = 0.02
    return {
        "gamma": 1.0 + 0.1 * jax.random.normal(k1, (1, d_model), jnp.float32),
        "beta": 0.1 * jax.random.normal(k2, (1, d_model), jnp.float32),
        "w1": s * jax.random.normal(k3, (d_model, d_ff), jnp.float32),
        "b1": s * jax.random.normal(k4, (1, d_ff), jnp.float32),
        "w2": s * jax.random.normal(k5, (d_ff, d_model), jnp.float32),
        "b2": s * jax.random.normal(k6, (1, d_model), jnp.float32),
    }


def sublayer_connection_ref(x, p, eps=1e-6):
    d = x.shape[-1]
    mu = x.mean(-1, keepdims=True)
    diff = x - mu
    std = jnp.sqrt((diff * diff).sum(-1, keepdims=True) / (d - 1))   # unbiased, like torch.std
    xn = p["gamma"][0] * diff / (std + eps) + p["beta"][0]
    hp = jax.lax.Precision.HIGHEST
    h = jnp.maximum(jnp.dot(xn, p["w1"], precision=hp) + p["b1"][0], 0.0)
    ff = jnp.dot(h, p["w2"], precision=hp) + p["b2"][0]
    return x + ff   # dropout == identity at inference


if __name__ == "__main__":
    # Small shapes: batch=2, seq=8, d_model=128 (lane-dense), d_ff=256.
    B, S, D, FF = 2, 8, 128, 256

    root = jax.random.PRNGKey(0)
    kx, kp = jax.random.split(root)
    x = jax.random.normal(kx, (B, S, D), jnp.float32)
    params_f32 = init_sublayer_params(kp, D, FF)
    ref = sublayer_connection_ref(x, params_f32)

    # 1) Default path: fused kernel, weights pre-cast to bf16 ONCE.
    params_bf16 = prepare_params(params_f32, jnp.bfloat16)
    out = sublayer_connection_forward(x, params_bf16)
    jax.block_until_ready(out)
    assert out.shape == (B, S, D)
    err = float(jnp.max(jnp.abs(out - ref)))
    assert err < 1e-2, f"fused bf16 path max err {err}"

    # 2) f32 weights, fused kernel, exact reciprocal (tight structural check).
    out_f32 = sublayer_connection_forward(x, params_f32)
    jax.block_until_ready(out_f32)
    err = float(jnp.max(jnp.abs(out_f32 - ref)))
    assert err < 2e-3, f"fused f32 path max err {err}"

    # 3) F-tiled fallback path (forced) — exercises the large-D/F code path.
    out_t = sublayer_connection_forward(x, params_bf16, force_tiled=True, f_block=128)
    jax.block_until_ready(out_t)
    err = float(jnp.max(jnp.abs(out_t - ref)))
    assert err < 1e-2, f"tiled bf16 path max err {err}"

    print("KERNEL_OK")
</pallas_src>

<mosaic_0001>
module attributes {stable_mosaic.version = 11 : i64} {
  func.func @sublayer_fused_kernel(%arg0: i32, %arg1: memref<16x128xf32, #tpu.memory_space<vmem>>, %arg2: memref<1x128xf32, #tpu.memory_space<vmem>>, %arg3: memref<1x128xf32, #tpu.memory_space<vmem>>, %arg4: memref<128x256xbf16, #tpu.memory_space<vmem>>, %arg5: memref<1x256xf32, #tpu.memory_space<vmem>>, %arg6: memref<256x128xbf16, #tpu.memory_space<vmem>>, %arg7: memref<1x128xf32, #tpu.memory_space<vmem>>, %arg8: memref<16x128xf32, #tpu.memory_space<vmem>>) attributes {dimension_semantics = [#tpu.dimension_semantics<parallel>], iteration_bounds = array<i64: 1>, scalar_prefetch = 0 : i64, scratch_operands = 0 : i64, tpu.core_type = #tpu.core_type<tc>, window_params = [{transform_indices = @transform_0, window_bounds = array<i64: 16, 128>}, {pipeline_mode = #tpu.pipeline_mode<synchronous>, transform_indices = @transform_1, window_bounds = array<i64: 1, 128>}, {pipeline_mode = #tpu.pipeline_mode<synchronous>, transform_indices = @transform_2, window_bounds = array<i64: 1, 128>}, {pipeline_mode = #tpu.pipeline_mode<synchronous>, transform_indices = @transform_3, window_bounds = array<i64: 128, 256>}, {pipeline_mode = #tpu.pipeline_mode<synchronous>, transform_indices = @transform_4, window_bounds = array<i64: 1, 256>}, {pipeline_mode = #tpu.pipeline_mode<synchronous>, transform_indices = @transform_5, window_bounds = array<i64: 256, 128>}, {pipeline_mode = #tpu.pipeline_mode<synchronous>, transform_indices = @transform_6, window_bounds = array<i64: 1, 128>}, {transform_indices = @transform_7, window_bounds = array<i64: 16, 128>}]} {
    %c0 = arith.constant 0 : index
    %c0_0 = arith.constant 0 : index
    %0 = vector.load %arg1[%c0, %c0_0] : memref<16x128xf32, #tpu.memory_space<vmem>>, vector<16x128xf32>
    %c0_1 = arith.constant 0 : index
    %c0_2 = arith.constant 0 : index
    %1 = vector.load %arg2[%c0_1, %c0_2] : memref<1x128xf32, #tpu.memory_space<vmem>>, vector<1x128xf32>
    %c0_3 = arith.constant 0 : index
    %c0_4 = arith.constant 0 : index
    %2 = vector.load %arg3[%c0_3, %c0_4] : memref<1x128xf32, #tpu.memory_space<vmem>>, vector<1x128xf32>
    %cst = arith.constant dense<0.000000e+00> : vector<16xf32>
    %3 = vector.multi_reduction <add>, %0, %cst [1] : vector<16x128xf32> to vector<16xf32>
    %4 = vector.shape_cast %3 : vector<16xf32> to vector<16x1xf32>
    %cst_5 = arith.constant 1.280000e+02 : f32
    %5 = vector.broadcast %cst_5 : f32 to vector<16x1xf32>
    %6 = arith.divf %4, %5 : vector<16x1xf32>
    %7 = vector.broadcast %6 : vector<16x1xf32> to vector<16x128xf32>
    %8 = arith.subf %0, %7 : vector<16x128xf32>
    %9 = arith.mulf %8, %8 : vector<16x128xf32>
    %cst_6 = arith.constant dense<0.000000e+00> : vector<16xf32>
    %10 = vector.multi_reduction <add>, %9, %cst_6 [1] : vector<16x128xf32> to vector<16xf32>
    %11 = vector.shape_cast %10 : vector<16xf32> to vector<16x1xf32>
    %cst_7 = arith.constant 0.00787401571 : f32
    %12 = vector.broadcast %cst_7 : f32 to vector<16x1xf32>
    %13 = arith.mulf %11, %12 : vector<16x1xf32>
    %14 = math.sqrt %13 : vector<16x1xf32>
    %cst_8 = arith.constant 9.99999997E-7 : f32
    %15 = vector.broadcast %cst_8 : f32 to vector<16x1xf32>
    %16 = arith.addf %14, %15 : vector<16x1xf32>
    %17 = tpu.reciprocal %16 {approx = true} : vector<16x1xf32> -> vector<16x1xf32>
    %18 = vector.broadcast %1 : vector<1x128xf32> to vector<16x128xf32>
    %19 = arith.mulf %18, %8 : vector<16x128xf32>
    %20 = vector.broadcast %17 : vector<16x1xf32> to vector<16x128xf32>
    %21 = arith.mulf %19, %20 : vector<16x128xf32>
    %22 = vector.broadcast %2 : vector<1x128xf32> to vector<16x128xf32>
    %23 = arith.addf %21, %22 : vector<16x128xf32>
    %24 = arith.truncf %23 : vector<16x128xf32> to vector<16x128xbf16>
    %c0_9 = arith.constant 0 : index
    %c0_10 = arith.constant 0 : index
    %25 = vector.load %arg4[%c0_9, %c0_10] : memref<128x256xbf16, #tpu.memory_space<vmem>>, vector<128x256xbf16>
    %cst_11 = arith.constant dense<0.000000e+00> : vector<16x256xf32>
    %26 = tpu.matmul %24, %25, %cst_11 {dimension_numbers = #tpu.dot_dimension_numbers<[1], [0], [0], [1], [0, 0, 1, 1], [], []>} : vector<16x128xbf16>, vector<128x256xbf16>, vector<16x256xf32> -> vector<16x256xf32>
    %c0_12 = arith.constant 0 : index
    %c0_13 = arith.constant 0 : index
    %27 = vector.load %arg5[%c0_12, %c0_13] : memref<1x256xf32, #tpu.memory_space<vmem>>, vector<1x256xf32>
    %28 = vector.broadcast %27 : vector<1x256xf32> to vector<16x256xf32>
    %29 = arith.addf %26, %28 : vector<16x256xf32>
    %cst_14 = arith.constant 0.000000e+00 : f32
    %30 = vector.broadcast %cst_14 : f32 to vector<16x256xf32>
    %31 = arith.maximumf %29, %30 : vector<16x256xf32>
    %32 = arith.truncf %31 : vector<16x256xf32> to vector<16x256xbf16>
    %c0_15 = arith.constant 0 : index
    %c0_16 = arith.constant 0 : index
    %33 = vector.load %arg6[%c0_15, %c0_16] : memref<256x128xbf16, #tpu.memory_space<vmem>>, vector<256x128xbf16>
    %cst_17 = arith.constant dense<0.000000e+00> : vector<16x128xf32>
    %34 = tpu.matmul %32, %33, %cst_17 {dimension_numbers = #tpu.dot_dimension_numbers<[1], [0], [0], [1], [0, 0, 1, 1], [], []>} : vector<16x256xbf16>, vector<256x128xbf16>, vector<16x128xf32> -> vector<16x128xf32>
    %c0_18 = arith.constant 0 : index
    %c0_19 = arith.constant 0 : index
    %35 = vector.load %arg7[%c0_18, %c0_19] : memref<1x128xf32, #tpu.memory_space<vmem>>, vector<1x128xf32>
    %36 = vector.broadcast %35 : vector<1x128xf32> to vector<16x128xf32>
    %37 = arith.addf %34, %36 : vector<16x128xf32>
    %38 = arith.addf %0, %37 : vector<16x128xf32>
    %c0_20 = arith.constant 0 : index
    %c0_21 = arith.constant 0 : index
    %39 = vector.load %arg8[%c0_20, %c0_21] : memref<16x128xf32, #tpu.memory_space<vmem>>, vector<16x128xf32>
    tpu.vector_store %arg8[%c0_20, %c0_21], %38 {strides = array<i32>} : memref<16x128xf32, #tpu.memory_space<vmem>>, vector<16x128xf32>,
    return
  }
  func.func @transform_0(%arg0: i32) -> (i32, i32) {
    %c0_i32 = arith.constant 0 : i32
    %c0_i32_0 = arith.constant 0 : i32
    return %arg0, %c0_i32 : i32, i32
  }
  func.func @transform_1(%arg0: i32) -> (i32, i32) {
    %c0_i32 = arith.constant 0 : i32
    %c0_i32_0 = arith.constant 0 : i32
    %c0_i32_1 = arith.constant 0 : i32
    return %c0_i32, %c0_i32_0 : i32, i32
  }
  func.func @transform_2(%arg0: i32) -> (i32, i32) {
    %c0_i32 = arith.constant 0 : i32
    %c0_i32_0 = arith.constant 0 : i32
    %c0_i32_1 = arith.constant 0 : i32
    return %c0_i32, %c0_i32_0 : i32, i32
  }
  func.func @transform_3(%arg0: i32) -> (i32, i32) {
    %c0_i32 = arith.constant 0 : i32
    %c0_i32_0 = arith.constant 0 : i32
    %c0_i32_1 = arith.constant 0 : i32
    return %c0_i32, %c0_i32_0 : i32, i32
  }
  func.func @transform_4(%arg0: i32) -> (i32, i32) {
    %c0_i32 = arith.constant 0 : i32
    %c0_i32_0 = arith.constant 0 : i32
    %c0_i32_1 = arith.constant 0 : i32
    return %c0_i32, %c0_i32_0 : i32, i32
  }
  func.func @transform_5(%arg0: i32) -> (i32, i32) {
    %c0_i32 = arith.constant 0 : i32
    %c0_i32_0 = arith.constant 0 : i32
    %c0_i32_1 = arith.constant 0 : i32
    return %c0_i32, %c0_i32_0 : i32, i32
  }
  func.func @transform_6(%arg0: i32) -> (i32, i32) {
    %c0_i32 = arith.constant 0 : i32
    %c0_i32_0 = arith.constant 0 : i32
    %c0_i32_1 = arith.constant 0 : i32
    return %c0_i32, %c0_i32_0 : i32, i32
  }
  func.func @transform_7(%arg0: i32) -> (i32, i32) {
    %c0_i32 = arith.constant 0 : i32
    %c0_i32_0 = arith.constant 0 : i32
    return %arg0, %c0_i32 : i32, i32
  }
}

</mosaic_0001>

<llo_original>
// kernel: tpu_custom_call.1
$region0: #{tpu_custom_call.1}
  #allocation0 [shape = 'u32[]', space=smem, size = 0x4, offset = 0x4, fixed_abs, tag = 'smem constant byte address 0x4 - core index']
  #allocation1 [shape = 'u32[144,128]{1,0:T(1,128)}', space=vmem, size = 0x12000, scoped, tag = 'internal scratch']
  %s0 = inlined_call_operand.hbm [shape: f32[16,128], index: 0, kind: input, shape index: {}]
  %s1 = inlined_call_operand.vmem [shape: f32[1,128], index: 1, kind: input, shape index: {}]
  %s2 = inlined_call_operand.hbm [shape: f32[1,128], index: 2, kind: input, shape index: {}]
  %s3 = inlined_call_operand.hbm [shape: bf16[128,256], index: 3, kind: input, shape index: {}]
  %s4 = inlined_call_operand.vmem [shape: f32[1,256], index: 4, kind: input, shape index: {}]
  %s5 = inlined_call_operand.hbm [shape: bf16[256,128], index: 5, kind: input, shape index: {}]
  %s6 = inlined_call_operand.vmem [shape: f32[1,128], index: 6, kind: input, shape index: {}]
  %s7 = inlined_call_operand.hbm [shape: f32[16,128], index: 7, kind: output, shape index: {}]
  %s8 = sld [smem:[#allocation0]]
  $region54: #{tpu_custom_call.1} parent=0
    _
  %s10 = ssub.s32 1, %s8
  %s11 = scalar_select 0, %s10, %s8
  $region1: #{tpu_custom_call.1} parent=0
    #allocation2 [shape = 'u8[8192]{0}', space=vmem, size = 0x2000, scoped, tag = 'input window, operand 0, single buffered']
    #allocation3 [shape = 's32[1]{0}', space=sflag, size = 0x4, scoped, tag = 'scoped memory for tpu_custom_call.1']
    #allocation4 [shape = 's32[1]{0}', space=sflag, size = 0x4, scoped, tag = 'scoped memory for tpu_custom_call.1']
    #allocation5 [shape = 'u8[512]{0}', space=vmem, size = 0x400, scoped, tag = 'input window, operand 2, single buffered']
    #allocation6 [shape = 's32[1]{0}', space=sflag, size = 0x4, scoped, tag = 'scoped memory for tpu_custom_call.1']
    #allocation7 [shape = 'u8[65536]{0}', space=vmem, size = 0x10000, scoped, tag = 'input window, operand 3, single buffered']
    #allocation8 [shape = 'u8[65536]{0}', space=vmem, size = 0x10000, scoped, tag = 'input window, operand 5, single buffered']
    #allocation9 [shape = 's32[1]{0}', space=sflag, size = 0x4, scoped, tag = 'scoped memory for tpu_custom_call.1']
    #allocation10 [shape = 'u8[8192]{0}', space=vmem, size = 0x2000, scoped, tag = 'output window, operand 0, single buffered']
    %12 = vsyncpa [#allocation3], 0
    %13 = vsyncpa [#allocation6], 0
    %14 = vsyncpa [#allocation9], 0
    %15 = vsyncpa [#allocation4], 0
    // Predicated region
    $region2: #{tpu_custom_call.1} parent=1 // pred_check
      _
    $region3: #{tpu_custom_call.1} parent=1 // pred_check_branch
      %17 = sbr.rel (0) target = $region5
    $region4: #{tpu_custom_call.1} parent=1 // pred_region
      %s19 = ssub.s32 256, 256
      %20 = vsyncadd [#allocation3], %s19
      %s21 = sshll.u32 [#allocation2], 4
      %s22 = int_to_ptr.vmem [resolvable:$true] %s21
      %27 = dma.hbm_to_vmem [thread:$0]  %s0, 256, %s22, [#allocation3], 128, 128, 8
    $region5: #{tpu_custom_call.1} parent=1 // pred_fallthru
      _
    // Predicated region
    $region6: #{tpu_custom_call.1} parent=1 // pred_check
      _
    $region7: #{tpu_custom_call.1} parent=1 // pred_check_branch
      %29 = sbr.rel (0) target = $region9
    $region8: #{tpu_custom_call.1} parent=1 // pred_region
      _
    $region9: #{tpu_custom_call.1} parent=1 // pred_fallthru
      _
    // Predicated region
    $region10: #{tpu_custom_call.1} parent=1 // pred_check
      _
    $region11: #{tpu_custom_call.1} parent=1 // pred_check_branch
      %31 = sbr.rel (0) target = $region13
    $region12: #{tpu_custom_call.1} parent=1 // pred_region
      %s33 = ssub.s32 16, 16
      %34 = vsyncadd [#allocation6], %s33
      %s36 = sshll.u32 [#allocation5], 4
      %s37 = int_to_ptr.vmem [resolvable:$true] %s36
      %39 = dma.hbm_to_vmem [thread:$0]  %s2, 16, %s37, [#allocation6]
    $region13: #{tpu_custom_call.1} parent=1 // pred_fallthru
      _
    // Predicated region
    $region14: #{tpu_custom_call.1} parent=1 // pred_check
      _
    $region15: #{tpu_custom_call.1} parent=1 // pred_check_branch
      %41 = sbr.rel (0) target = $region17
    $region16: #{tpu_custom_call.1} parent=1 // pred_region
      %s43 = ssub.s32 2048, 2048
      %44 = vsyncadd [#allocation6], %s43
      %s45 = sshll.u32 [#allocation7], 4
      %s46 = int_to_ptr.vmem [resolvable:$true] %s45
      %51 = dma.hbm_to_vmem [thread:$0]  %s3, 2048, %s46, [#allocation6], 128, 128, 8
    $region17: #{tpu_custom_call.1} parent=1 // pred_fallthru
      _
    // Predicated region
    $region18: #{tpu_custom_call.1} parent=1 // pred_check
      _
    $region19: #{tpu_custom_call.1} parent=1 // pred_check_branch
      %53 = sbr.rel (0) target = $region21
    $region20: #{tpu_custom_call.1} parent=1 // pred_region
      _
    $region21: #{tpu_custom_call.1} parent=1 // pred_fallthru
      _
    // Predicated region
    $region22: #{tpu_custom_call.1} parent=1 // pred_check
      _
    $region23: #{tpu_custom_call.1} parent=1 // pred_check_branch
      %55 = sbr.rel (0) target = $region25
    $region24: #{tpu_custom_call.1} parent=1 // pred_region
      %s57 = ssub.s32 2048, 2048
      %58 = vsyncadd [#allocation9], %s57
      %s59 = sshll.u32 [#allocation8], 4
      %s60 = int_to_ptr.vmem [resolvable:$true] %s59
      %65 = dma.hbm_to_vmem [thread:$0]  %s5, 2048, %s60, [#allocation9], 64, 64, 4
    $region25: #{tpu_custom_call.1} parent=1 // pred_fallthru
      _
    // Predicated region
    $region26: #{tpu_custom_call.1} parent=1 // pred_check
      _
    $region27: #{tpu_custom_call.1} parent=1 // pred_check_branch
      %67 = sbr.rel (0) target = $region29
    $region28: #{tpu_custom_call.1} parent=1 // pred_region
      _
    $region29: #{tpu_custom_call.1} parent=1 // pred_fallthru
      _
    // Predicated region
    $region30: #{tpu_custom_call.1} parent=1 // pred_check
      _
    $region31: #{tpu_custom_call.1} parent=1 // pred_check_branch
      %69 = sbr.rel (0) target = $region33
    $region32: #{tpu_custom_call.1} parent=1 // pred_region
      %70 = dma.done [#allocation3], 256
    $region33: #{tpu_custom_call.1} parent=1 // pred_fallthru
      _
    // Predicated region
    $region34: #{tpu_custom_call.1} parent=1 // pred_check
      _
    $region35: #{tpu_custom_call.1} parent=1 // pred_check_branch
      %72 = sbr.rel (0) target = $region37
    $region36: #{tpu_custom_call.1} parent=1 // pred_region
      %73 = dma.done [#allocation6], 16
    $region37: #{tpu_custom_call.1} parent=1 // pred_fallthru
      _
    // Predicated region
    $region38: #{tpu_custom_call.1} parent=1 // pred_check
      _
    $region39: #{tpu_custom_call.1} parent=1 // pred_check_branch
      %75 = sbr.rel (0) target = $region41
    $region40: #{tpu_custom_call.1} parent=1 // pred_region
      %76 = dma.done [#allocation6], 2048
    $region41: #{tpu_custom_call.1} parent=1 // pred_fallthru
      _
    // Predicated region
    $region42: #{tpu_custom_call.1} parent=1 // pred_check
      _
    $region43: #{tpu_custom_call.1} parent=1 // pred_check_branch
      %78 = sbr.rel (0) target = $region45
    $region44: #{tpu_custom_call.1} parent=1 // pred_region
      %79 = dma.done [#allocation9], 2048
    $region45: #{tpu_custom_call.1} parent=1 // pred_fallthru
      _
    %v81 = vld [vmem:[#allocation2] sm:$0xff]
    %v82 = vld [vmem:[#allocation2 + $0x8] sm:$0xff]
    %v83 = vld [vmem:[%s1] sm:$0x1]
    %v84 = vld [vmem:[#allocation5] sm:$0x1]
    %85 = vadd.xlane.f32.xlu0 %v81
    %v86 = vpop.xlane.xlu0 %85
    %87 = vadd.xlane.f32.xlu0 %v82
    %v88 = vpop.xlane.xlu0 %87
    %v89 = vrcp.pop 128.0
    %v90 = vmul.f32 %v86, %v89
    %v91 = vmul.f32 %v88, %v89
    %v92 = vsub.f32 %v81, %v90
    %v93 = vsub.f32 %v82, %v91
    %v94 = vmul.f32 %v92, %v92
    %v95 = vmul.f32 %v93, %v93
    %96 = vadd.xlane.f32.xlu0 %v94
    %v97 = vpop.xlane.xlu0 %96
    %98 = vadd.xlane.f32.xlu0 %v95
    %v99 = vpop.xlane.xlu0 %98
    %v100 = vmul.f32 %v97, 0.007874016
    %v101 = vmul.f32 %v99, 0.007874016
    %v102 = vrsqrt.pop %v100
    %v103 = vmul.f32 %v100, %v102
    %vm104 = vcmp.eq.f32.partialorder %v100, inf
    %v105 = vsel %vm104, %v100, %v103
    %vm106 = vcmp.eq.f32.partialorder %v100, 0.0
    %v107 = vand.u32 %v100, 2147483648
    %v108 = vsel %vm106, %v107, %v105
    %v109 = vrsqrt.pop %v101
    %v110 = vmul.f32 %v101, %v109
    %vm111 = vcmp.eq.f32.partialorder %v101, inf
    %v112 = vsel %vm111, %v101, %v110
    %vm113 = vcmp.eq.f32.partialorder %v101, 0.0
    %v114 = vand.u32 %v101, 2147483648
    %v115 = vsel %vm113, %v114, %v112
    %v116 = vadd.f32 %v108, 1e-06
    %v117 = vadd.f32 %v115, 1e-06
    %v118 = vrcp.pop %v116
    %v119 = vrcp.pop %v117
    %v121 = vlaneseq
    %v122 = vshrl.u32 %v121, 7
    %v123 = vsub.s32 0, %v122
    %v124 = vrot.slane %v83, %v123
    %v126 = vmul.f32 %v124, %v92
    %v127 = vmul.f32 %v124, %v93
    %v128 = vmul.f32 %v126, %v118
    %v129 = vmul.f32 %v127, %v119
    %v131 = vlaneseq
    %v132 = vshrl.u32 %v131, 7
    %v133 = vsub.s32 0, %v132
    %v134 = vrot.slane %v84, %v133
    %v136 = vadd.f32 %v128, %v134
    %v137 = vadd.f32 %v129, %v134
    %v138 = vpack.c.bf16 %v137, %v136
    %v139 = vld [vmem:[#allocation7] sm:$0xff]
    %v140 = vld [vmem:[#allocation7 + $0x8] sm:$0xff]
    %v141 = vld [vmem:[#allocation7 + $0x10] sm:$0xff]
    %v142 = vld [vmem:[#allocation7 + $0x18] sm:$0xff]
    %v143 = vld [vmem:[#allocation7 + $0x20] sm:$0xff]
    %v144 = vld [vmem:[#allocation7 + $0x28] sm:$0xff]
    %v145 = vld [vmem:[#allocation7 + $0x30] sm:$0xff]
    %v146 = vld [vmem:[#allocation7 + $0x38] sm:$0xff]
    %v147 = vld [vmem:[#allocation7 + $0x40] sm:$0xff]
    %v148 = vld [vmem:[#allocation7 + $0x48] sm:$0xff]
    %v149 = vld [vmem:[#allocation7 + $0x50] sm:$0xff]
    %v150 = vld [vmem:[#allocation7 + $0x58] sm:$0xff]
    %v151 = vld [vmem:[#allocation7 + $0x60] sm:$0xff]
    %v152 = vld [vmem:[#allocation7 + $0x68] sm:$0xff]
    %v153 = vld [vmem:[#allocation7 + $0x70] sm:$0xff]
    %v154 = vld [vmem:[#allocation7 + $0x78] sm:$0xff]
    %v155 = vld [vmem:[%s4] sm:$0x3]
    %v157 = vlaneseq
    %v158 = vshrl.u32 %v157, 7
    %v159 = vsub.s32 0, %v158
    %v160 = vrot.slane %v155, %v159
    %v161 = vlaneseq
    %v162 = vshrl.u32 %v161, 7
    %v163 = vsub.s32 1, %v162
    %v164 = vrot.slane %v155, %v163
    %v183 = vunpack.c.l.b16 %v139
    %v184 = vunpack.c.h.b16 %v139
    %v185 = vunpack.c.l.b16 %v140
    %v186 = vunpack.c.h.b16 %v140
    %v187 = vunpack.c.l.b16 %v141
    %v188 = vunpack.c.h.b16 %v141
    %v189 = vunpack.c.l.b16 %v142
    %v190 = vunpack.c.h.b16 %v142
    %v191 = vunpack.c.l.b16 %v143
    %v192 = vunpack.c.h.b16 %v143
    %v193 = vunpack.c.l.b16 %v144
    %v194 = vunpack.c.h.b16 %v144
    %v195 = vunpack.c.l.b16 %v145
    %v196 = vunpack.c.h.b16 %v145
    %v197 = vunpack.c.l.b16 %v146
    %v198 = vunpack.c.h.b16 %v146
    %v199 = vunpack.c.l.b16 %v147
    %v200 = vunpack.c.h.b16 %v147
    %v201 = vunpack.c.l.b16 %v148
    %v202 = vunpack.c.h.b16 %v148
    %v203 = vunpack.c.l.b16 %v149
    %v204 = vunpack.c.h.b16 %v149
    %v205 = vunpack.c.l.b16 %v150
    %v206 = vunpack.c.h.b16 %v150
    %v207 = vunpack.c.l.b16 %v151
    %v208 = vunpack.c.h.b16 %v151
    %v209 = vunpack.c.l.b16 %v152
    %v210 = vunpack.c.h.b16 %v152
    %v211 = vunpack.c.l.b16 %v153
    %v212 = vunpack.c.h.b16 %v153
    %v213 = vunpack.c.l.b16 %v154
    %v214 = vunpack.c.h.b16 %v154
    %v215 = vpack.c.b16 %v185, %v183
    %v216 = vpack.c.b16 %v186, %v184
    %v217 = vpack.c.b16 %v189, %v187
    %v218 = vpack.c.b16 %v190, %v188
    %v219 = vpack.c.b16 %v193, %v191
    %v220 = vpack.c.b16 %v194, %v192
    %v221 = vpack.c.b16 %v197, %v195
    %v222 = vpack.c.b16 %v198, %v196
    %v223 = vpack.c.b16 %v201, %v199
    %v224 = vpack.c.b16 %v202, %v200
    %v225 = vpack.c.b16 %v205, %v203
    %v226 = vpack.c.b16 %v206, %v204
    %v227 = vpack.c.b16 %v209, %v207
    %v228 = vpack.c.b16 %v210, %v208
    %v229 = vpack.c.b16 %v213, %v211
    %v230 = vpack.c.b16 %v214, %v212
    %247 = vmatprep.subr.bf16.mxu0 %v230
    %248 = vmatpush1.bf16.msra.mxu0 %v229
    %249 = vmatprep.subr.bf16.mxu0 %v228
    %250 = vmatpush1.bf16.msra.mxu0 %v227
    %251 = vmatprep.subr.bf16.mxu0 %v226
    %252 = vmatpush1.bf16.msra.mxu0 %v225
    %253 = vmatprep.subr.bf16.mxu0 %v224
    %254 = vmatpush1.bf16.msra.mxu0 %v223
    %255 = vmatprep.subr.bf16.mxu0 %v222
    %256 = vmatpush1.bf16.msra.mxu0 %v221
    %257 = vmatprep.subr.bf16.mxu0 %v220
    %258 = vmatpush1.bf16.msra.mxu0 %v219
    %259 = vmatprep.subr.bf16.mxu0 %v218
    %260 = vmatpush1.bf16.msra.mxu0 %v217
    %261 = vmatprep.subr.bf16.mxu0 %v216
    %262 = vmatpush1.bf16.msra.mxu0 %v215
    %263 = vmatprep.subr.bf16.mxu0 0
    %264 = vmatpush2.bf16.msra.mxu0 0
    %265 = vmatprep.subr.bf16.mxu0 0
    %266 = vmatpush2.bf16.msra.mxu0 0
    %267 = vmatprep.subr.bf16.mxu0 0
    %268 = vmatpush2.bf16.msra.mxu0 0
    %269 = vmatprep.subr.bf16.mxu0 0
    %270 = vmatpush2.bf16.msra.mxu0 0
    %271 = vmatprep.subr.bf16.mxu0 0
    %272 = vmatpush2.bf16.msra.mxu0 0
    %273 = vmatprep.subr.bf16.mxu0 0
    %274 = vmatpush2.bf16.msra.mxu0 0
    %275 = vmatprep.subr.bf16.mxu0 0
    %276 = vmatpush2.bf16.msra.mxu0 0
    %277 = vmatprep.subr.bf16.mxu0 0
    %278 = vmatpush2.bf16.msra.mxu0 0
    %279 = vmatprep.mubr.bf16.mxu0 0
    %280 = vmatmul.mubr.bf16.gmra.mxu0 %v138
    %v281 = vpop.f32.mrf.mxu0
    %v282 = vadd.f32 %v160, %v281
    %v283 = vpop.f32.mrf.mxu0
    %v284 = vadd.f32 %v164, %v283
    %v285 = vpop.f32.mrf.mxu0
    %v286 = vadd.f32 %v160, %v285
    %v287 = vpop.f32.mrf.mxu0
    %v288 = vadd.f32 %v164, %v287
    %289 = vdwg.mxu0
    %v290 = vmax.f32 %v282, 0.0
    %v291 = vmax.f32 %v284, 0.0
    %v292 = vmax.f32 %v286, 0.0
    %v293 = vmax.f32 %v288, 0.0
    %v294 = vpack.c.bf16 %v292, %v290
    %v295 = vpack.c.bf16 %v293, %v291
    %v296 = vld [vmem:[#allocation8] sm:$0xf]
    %v297 = vld [vmem:[#allocation8 + $0x4] sm:$0xf]
    %v298 = vld [vmem:[#allocation8 + $0x8] sm:$0xf]
    %v299 = vld [vmem:[#allocation8 + $0xc] sm:$0xf]
    %v300 = vld [vmem:[#allocation8 + $0x10] sm:$0xf]
    %v301 = vld [vmem:[#allocation8 + $0x14] sm:$0xf]
    %v302 = vld [vmem:[#allocation8 + $0x18] sm:$0xf]
    %v303 = vld [vmem:[#allocation8 + $0x1c] sm:$0xf]
    %v304 = vld [vmem:[#allocation8 + $0x20] sm:$0xf]
    %v305 = vld [vmem:[#allocation8 + $0x24] sm:$0xf]
    %v306 = vld [vmem:[#allocation8 + $0x28] sm:$0xf]
    %v307 = vld [vmem:[#allocation8 + $0x2c] sm:$0xf]
    %v308 = vld [vmem:[#allocation8 + $0x30] sm:$0xf]
    %v309 = vld [vmem:[#allocation8 + $0x34] sm:$0xf]
    %v310 = vld [vmem:[#allocation8 + $0x38] sm:$0xf]
    %v311 = vld [vmem:[#allocation8 + $0x3c] sm:$0xf]
    %v312 = vld [vmem:[#allocation8 + $0x40] sm:$0xf]
    %v313 = vld [vmem:[#allocation8 + $0x44] sm:$0xf]
    %v314 = vld [vmem:[#allocation8 + $0x48] sm:$0xf]
    %v315 = vld [vmem:[#allocation8 + $0x4c] sm:$0xf]
    %v316 = vld [vmem:[#allocation8 + $0x50] sm:$0xf]
    %v317 = vld [vmem:[#allocation8 + $0x54] sm:$0xf]
    %v318 = vld [vmem:[#allocation8 + $0x58] sm:$0xf]
    %v319 = vld [vmem:[#allocation8 + $0x5c] sm:$0xf]
    %v320 = vld [vmem:[#allocation8 + $0x60] sm:$0xf]
    %v321 = vld [vmem:[#allocation8 + $0x64] sm:$0xf]
    %v322 = vld [vmem:[#allocation8 + $0x68] sm:$0xf]
    %v323 = vld [vmem:[#allocation8 + $0x6c] sm:$0xf]
    %v324 = vld [vmem:[#allocation8 + $0x70] sm:$0xf]
    %v325 = vld [vmem:[#allocation8 + $0x74] sm:$0xf]
    %v326 = vld [vmem:[#allocation8 + $0x78] sm:$0xf]
    %v327 = vld [vmem:[#allocation8 + $0x7c] sm:$0xf]
    %v328 = vld [vmem:[%s6] sm:$0x1]
    %v330 = vlaneseq
    %v331 = vshrl.u32 %v330, 7
    %v332 = vsub.s32 0, %v331
    %v333 = vrot.slane %v328, %v332
    %v367 = vunpack.c.l.b16 %v296
    %v368 = vunpack.c.l.b16 %v297
    %v369 = vunpack.c.l.b16 %v298
    %v370 = vunpack.c.l.b16 %v299
    %v371 = vunpack.c.l.b16 %v300
    %v372 = vunpack.c.l.b16 %v301
    %v373 = vunpack.c.l.b16 %v302
    %v374 = vunpack.c.l.b16 %v303
    %v375 = vunpack.c.l.b16 %v304
    %v376 = vunpack.c.l.b16 %v305
    %v377 = vunpack.c.l.b16 %v306
    %v378 = vunpack.c.l.b16 %v307
    %v379 = vunpack.c.l.b16 %v308
    %v380 = vunpack.c.l.b16 %v309
    %v381 = vunpack.c.l.b16 %v310
    %v382 = vunpack.c.l.b16 %v311
    %v383 = vunpack.c.l.b16 %v312
    %v384 = vunpack.c.l.b16 %v313
    %v385 = vunpack.c.l.b16 %v314
    %v386 = vunpack.c.l.b16 %v315
    %v387 = vunpack.c.l.b16 %v316
    %v388 = vunpack.c.l.b16 %v317
    %v389 = vunpack.c.l.b16 %v318
    %v390 = vunpack.c.l.b16 %v319
    %v391 = vunpack.c.l.b16 %v320
    %v392 = vunpack.c.l.b16 %v321
    %v393 = vunpack.c.l.b16 %v322
    %v394 = vunpack.c.l.b16 %v323
    %v395 = vunpack.c.l.b16 %v324
    %v396 = vunpack.c.l.b16 %v325
    %v397 = vunpack.c.l.b16 %v326
    %v398 = vunpack.c.l.b16 %v327
    %v399 = vpack.c.b16 %v368, %v367
    %v400 = vpack.c.b16 %v370, %v369
    %v401 = vpack.c.b16 %v372, %v371
    %v402 = vpack.c.b16 %v374, %v373
    %v403 = vpack.c.b16 %v376, %v375
    %v404 = vpack.c.b16 %v378, %v377
    %v405 = vpack.c.b16 %v380, %v379
    %v406 = vpack.c.b16 %v382, %v381
    %v407 = vpack.c.b16 %v384, %v383
    %v408 = vpack.c.b16 %v386, %v385
    %v409 = vpack.c.b16 %v388, %v387
    %v410 = vpack.c.b16 %v390, %v389
    %v411 = vpack.c.b16 %v392, %v391
    %v412 = vpack.c.b16 %v394, %v393
    %v413 = vpack.c.b16 %v396, %v395
    %v414 = vpack.c.b16 %v398, %v397
    %431 = vmatprep.subr.bf16.mxu0 0
    %432 = vmatpush1.bf16.msra.mxu0 %v406
    %433 = vmatprep.subr.bf16.mxu0 0
    %434 = vmatpush1.bf16.msra.mxu0 %v405
    %435 = vmatprep.subr.bf16.mxu0 0
    %436 = vmatpush1.bf16.msra.mxu0 %v404
    %437 = vmatprep.subr.bf16.mxu0 0
    %438 = vmatpush1.bf16.msra.mxu0 %v403
    %439 = vmatprep.subr.bf16.mxu0 0
    %440 = vmatpush1.bf16.msra.mxu0 %v402
    %441 = vmatprep.subr.bf16.mxu0 0
    %442 = vmatpush1.bf16.msra.mxu0 %v401
    %443 = vmatprep.subr.bf16.mxu0 0
    %444 = vmatpush1.bf16.msra.mxu0 %v400
    %445 = vmatprep.subr.bf16.mxu0 0
    %446 = vmatpush1.bf16.msra.mxu0 %v399
    %447 = vmatprep.subr.bf16.mxu0 0
    %448 = vmatpush2.bf16.msra.mxu0 %v414
    %449 = vmatprep.subr.bf16.mxu0 0
    %450 = vmatpush2.bf16.msra.mxu0 %v413
    %451 = vmatprep.subr.bf16.mxu0 0
    %452 = vmatpush2.bf16.msra.mxu0 %v412
    %453 = vmatprep.subr.bf16.mxu0 0
    %454 = vmatpush2.bf16.msra.mxu0 %v411
    %455 = vmatprep.subr.bf16.mxu0 0
    %456 = vmatpush2.bf16.msra.mxu0 %v410
    %457 = vmatprep.subr.bf16.mxu0 0
    %458 = vmatpush2.bf16.msra.mxu0 %v409
    %459 = vmatprep.subr.bf16.mxu0 0
    %460 = vmatpush2.bf16.msra.mxu0 %v408
    %461 = vmatprep.subr.bf16.mxu0 0
    %462 = vmatpush2.bf16.msra.mxu0 %v407
    %463 = vmatprep.mubr.bf16.mxu0 %v295
    %464 = vmatmul.mubr.bf16.gmra.mxu0 %v294
    %v465 = vpop.f32.mrf.mxu0
    %v466 = vadd.f32 %v333, %v465
    %v467 = vpop.f32.mrf.mxu0
    %v468 = vpop.f32.mrf.mxu0
    %v469 = vadd.f32 %v333, %v468
    %v470 = vpop.f32.mrf.mxu0
    %471 = vdwg.mxu0
    %v472 = vadd.f32 %v81, %v466
    %v473 = vadd.f32 %v82, %v469
    %474 = vst [vmem:[#allocation10] sm:$0xff] %v472
    %475 = vst [vmem:[#allocation10 + $0x8] sm:$0xff] %v473
    // Predicated region
    $region46: #{tpu_custom_call.1} parent=1 // pred_check
      _
    $region47: #{tpu_custom_call.1} parent=1 // pred_check_branch
      %477 = sbr.rel (0) target = $region49
    $region48: #{tpu_custom_call.1} parent=1 // pred_region
      %s479 = ssub.s32 256, 256
      %480 = vsyncadd [#allocation4], %s479
      %s481 = sshll.u32 [#allocation10], 4
      %s482 = int_to_ptr.vmem [resolvable:$true] %s481
      %487 = dma.vmem_to_hbm [thread:$0]  %s482, 256, %s7, [#allocation4], 128, 128, 8
    $region49: #{tpu_custom_call.1} parent=1 // pred_fallthru
      _
    // Predicated region
    $region50: #{tpu_custom_call.1} parent=1 // pred_check
      _
    $region51: #{tpu_custom_call.1} parent=1 // pred_check_branch
      %489 = sbr.rel (0) target = $region53
    $region52: #{tpu_custom_call.1} parent=1 // pred_region
      %490 = dma.done [#allocation4], 256
    $region53: #{tpu_custom_call.1} parent=1 // pred_fallthru
      _
    %491 = vsyncpa [#allocation3], 1
    %492 = vsyncpa [#allocation6], 1
    %493 = vsyncpa [#allocation9], 1
    %494 = vsyncpa [#allocation4], 1

</llo_original>
